<compile_context>
chip_gen: v7x
topology: tpu7x:2x2x1
jax: 0.10.0
libtpu: 0.0.40
codegen_flags: <defaults>
</compile_context>

<pallas_src>
import functools

import jax
import jax.numpy as jnp
from jax.experimental import pallas as pl
from jax.experimental.pallas import tpu as pltpu


def _label_smoothing_loss_kernel(x_ref, tgt_ref, out_ref, acc_ref, *,
                                 confidence, eps, n_rows, n_classes,
                                 blocks_per_split):
    p = pl.program_id(0)            # batch half (parallel across TCs on v7x)
    i = pl.program_id(1)            # block within this half (reduction axis)
    tn = x_ref.shape[1]             # columns (= batch rows) per block

    @pl.when(i == 0)
    def _init():
        acc_ref[...] = jnp.zeros_like(acc_ref)

    tgt = tgt_ref[...]              # (1, tn) int32 class indices

    # Chained elementwise (VPU/EUP) math over the C class rows; fully lane-dense.
    row0 = x_ref[pl.ds(0, 1), :].astype(jnp.float32)         # (1, tn)
    rows = [row0]
    m = row0                        # running max over classes
    s = row0                        # running sum over classes
    x_t = row0                      # x[target]  (covers target == 0)
    for k in range(1, n_classes):
        rk = x_ref[pl.ds(k, 1), :].astype(jnp.float32)
        rows.append(rk)
        m = jnp.maximum(m, rk)
        s = s + rk
        x_t = jnp.where(tgt == k, rk, x_t)

    se = jnp.exp(rows[0] - m)
    for k in range(1, n_classes):
        se = se + jnp.exp(rows[k] - m)
    lse = jnp.log(se)

    # Folded:  sum_c(-targets_c * log_probs_c)
    #        = (conf + C*eps)*(m + lse) - eps*sum_c(x) - conf*x[target]
    loss_cols = ((confidence + n_classes * eps) * (m + lse)
                 - eps * s - confidence * x_t)                # (1, tn)

    # True (unclamped) global block index for this (half, step). Phantom blocks
    # (past the last real block) and the ragged tail are handled by the mask.
    b = p * blocks_per_split + i
    block_start = b * tn

    @pl.when(block_start + tn <= n_rows)      # full block: unmasked accumulate
    def _acc_full():
        acc_ref[...] += loss_cols

    @pl.when(block_start + tn > n_rows)       # ragged / phantom block: masked
    def _acc_masked():
        col = jax.lax.broadcasted_iota(jnp.int32, (1, tn), 1)
        valid = (block_start + col) < n_rows
        # NOTE: must stay a select (where), not multiply-by-mask -- the dead
        # lanes may hold NaN/Inf from uninitialized HBM padding.
        acc_ref[...] += jnp.where(valid, loss_cols, 0.0)

    @pl.when(i == pl.num_programs(1) - 1)
    def _finalize():
        # Single cross-lane reduce per half; un-normalized partial sum to SMEM.
        out_ref[0, 0] = jnp.sum(acc_ref[...])


def _vmem_capacity_bytes():
    try:
        return int(pltpu.get_tpu_info().vmem_capacity_bytes)
    except Exception:               # conservative fallback (v7x-sized VMEM)
        return 64 * 1024 * 1024


def _choose_tile_n(n, c, x_dtype, vmem_limit_bytes):
    """Columns (batch rows) per block under a generation-aware VMEM budget."""
    itemsize = jnp.dtype(x_dtype).itemsize
    sublane = 8 * max(1, 4 // itemsize)              # 8 (f32) / 16 (bf16) / 32 (i8)
    padded_c = ((c + sublane - 1) // sublane) * sublane
    x_bytes_per_col = padded_c * itemsize            # logits block, sublane-padded
    tgt_bytes_per_col = 8 * 4                        # (1, tn) int32 pads to 8 sublanes
    acc_bytes_per_col = 8 * 4                        # (1, tn) f32 accumulator (1 buf)
    per_col = 2 * (x_bytes_per_col + tgt_bytes_per_col) + acc_bytes_per_col
    budget = int(vmem_limit_bytes * 0.6)             # headroom for misc scratch
    tile = budget // per_col
    tile = max(128, min(tile, 256 * 1024))
    tile = (tile // 128) * 128
    return n if n <= tile else tile


def label_smoothing_loss(x, target, *, classes=3, smoothing=0.1, tile_n=None):
    """x: (N, C) logits (any float dtype), target: (N,) int labels -> scalar f32 loss."""
    n, c = x.shape
    assert c == classes
    confidence = 1.0 - smoothing
    eps = smoothing / (classes - 1)

    # Class-major, lane-dense layout: logits (C, N), labels (1, N).
    # (Wrapper-side layout plumbing; with C=3 the row-major layout wastes ~97%
    # of every vreg inside the kernel.)
    x_cm = x.T
    tgt_cm = target.astype(jnp.int32).reshape(1, n)

    vmem_cap = _vmem_capacity_bytes()
    vmem_limit = min(max(32 * 1024 * 1024, (vmem_cap * 3) // 4), vmem_cap)

    if tile_n is None:
        tile_n = _choose_tile_n(n, c, x.dtype, vmem_limit)
    tile_n = min(tile_n, n)
    if tile_n < n:
        # Lane-dim blocks must be a multiple of 128 (or span the full axis).
        tile_n = min(max(128, (tile_n // 128) * 128), n)

    n_blocks = pl.cdiv(n, tile_n)
    num_splits = 2 if n_blocks >= 2 else 1           # feed both TCs on v7x
    blocks_per_split = pl.cdiv(n_blocks, num_splits)
    grid = (num_splits, blocks_per_split)

    def _col_block(p, i):
        # Clamp so phantom blocks (odd n_blocks split 2 ways) never DMA out of
        # bounds; the kernel masks them out via the true (unclamped) index.
        return jnp.minimum(p * blocks_per_split + i, n_blocks - 1)

    kernel = functools.partial(
        _label_smoothing_loss_kernel,
        confidence=confidence,
        eps=eps,
        n_rows=n,
        n_classes=classes,
        blocks_per_split=blocks_per_split,
    )

    partials = pl.pallas_call(
        kernel,
        out_shape=jax.ShapeDtypeStruct((num_splits, 1), jnp.float32),
        grid_spec=pltpu.PrefetchScalarGridSpec(
            num_scalar_prefetch=0,
            grid=grid,
            in_specs=[
                pl.BlockSpec((c, tile_n), lambda p, i: (0, _col_block(p, i))),  # logits
                pl.BlockSpec((1, tile_n), lambda p, i: (0, _col_block(p, i))),  # labels
            ],
            out_specs=pl.BlockSpec((1, 1), lambda p, i: (p, 0),
                                   memory_space=pltpu.MemorySpace.SMEM),
            scratch_shapes=[pltpu.VMEM((1, tile_n), jnp.float32)],
        ),
        compiler_params=pltpu.CompilerParams(
            dimension_semantics=("parallel", "arbitrary"),
            vmem_limit_bytes=int(vmem_limit),
        ),
    )(x_cm, tgt_cm)
    return jnp.sum(partials) * (1.0 / float(n * classes))


def _reference_loss(x, target, *, classes=3, smoothing=0.1):
    confidence = 1.0 - smoothing
    log_probs = jax.nn.log_softmax(x.astype(jnp.float32), axis=-1)
    onehot = jax.nn.one_hot(target, classes, dtype=jnp.float32) * confidence
    targets = onehot + smoothing / (classes - 1)
    return jnp.mean(-targets * log_probs)


if __name__ == "__main__":
    n_classes = 3          # classes = ('cherry', 'strawberry', 'tomato')

    # Case 1: small single-block batch, f32 logits (grid (1, 1)).
    kx, kt = jax.random.split(jax.random.PRNGKey(0))
    batch = 8
    x = jax.random.normal(kx, (batch, n_classes), dtype=jnp.float32)
    target = jax.random.randint(kt, (batch,), 0, n_classes, dtype=jnp.int32)
    loss = jax.block_until_ready(
        label_smoothing_loss(x, target, classes=n_classes, smoothing=0.1))
    ref = jax.block_until_ready(
        _reference_loss(x, target, classes=n_classes, smoothing=0.1))
    assert jnp.allclose(loss, ref, atol=1e-5, rtol=1e-5), (loss, ref)

    # Case 2: multi-block grid with a ragged last block and a phantom block on
    # the second parallel half (exercises masking, accumulation, 2-way split).
    kx2, kt2 = jax.random.split(jax.random.PRNGKey(1))
    batch2 = 300
    x2 = jax.random.normal(kx2, (batch2, n_classes), dtype=jnp.float32)
    t2 = jax.random.randint(kt2, (batch2,), 0, n_classes, dtype=jnp.int32)
    loss2 = jax.block_until_ready(
        label_smoothing_loss(x2, t2, classes=n_classes, smoothing=0.1, tile_n=128))
    ref2 = jax.block_until_ready(
        _reference_loss(x2, t2, classes=n_classes, smoothing=0.1))
    assert jnp.allclose(loss2, ref2, atol=1e-5, rtol=1e-5), (loss2, ref2)

    # Case 3: bf16 logits streamed at native width (cast to f32 in-kernel).
    x3 = x2.astype(jnp.bfloat16)
    loss3 = jax.block_until_ready(
        label_smoothing_loss(x3, t2, classes=n_classes, smoothing=0.1, tile_n=128))
    ref3 = jax.block_until_ready(
        _reference_loss(x3, t2, classes=n_classes, smoothing=0.1))
    assert jnp.allclose(loss3, ref3, atol=1e-4, rtol=1e-4), (loss3, ref3)

    print("KERNEL_OK")
</pallas_src>

<mosaic_0001>
module attributes {stable_mosaic.version = 11 : i64} {
  func.func @_label_smoothing_loss_kernel(%arg0: i32, %arg1: i32, %arg2: memref<3x8xf32, #tpu.memory_space<vmem>>, %arg3: memref<1x8xi32, #tpu.memory_space<vmem>>, %arg4: memref<1x1xf32, #tpu.memory_space<smem>>, %arg5: memref<1x8xf32, #tpu.memory_space<vmem>>) attributes {dimension_semantics = [#tpu.dimension_semantics<parallel>, #tpu.dimension_semantics<arbitrary>], iteration_bounds = array<i64: 1, 1>, scalar_prefetch = 0 : i64, scratch_operands = 1 : i64, tpu.core_type = #tpu.core_type<tc>, window_params = [{transform_indices = @transform_0, window_bounds = array<i64: 3, 8>}, {transform_indices = @transform_1, window_bounds = array<i64: 1, 8>}, {transform_indices = @transform_2, window_bounds = array<i64: 1, 1>}]} {
    %c0_i32 = arith.constant 0 : i32
    %0 = arith.cmpi eq, %arg1, %c0_i32 : i32
    %1 = arith.extui %0 : i1 to i32
    %c0_i32_0 = arith.constant 0 : i32
    %2 = arith.cmpi ne, %1, %c0_i32_0 : i32
    scf.if %2 {
      %cst_17 = arith.constant 0.000000e+00 : f32
      %49 = vector.broadcast %cst_17 : f32 to vector<1x8xf32>
      %c0_18 = arith.constant 0 : index
      %c0_19 = arith.constant 0 : index
      %50 = vector.load %arg5[%c0_18, %c0_19] : memref<1x8xf32, #tpu.memory_space<vmem>>, vector<1x8xf32>
      tpu.vector_store %arg5[%c0_18, %c0_19], %49 {strides = array<i32>} : memref<1x8xf32, #tpu.memory_space<vmem>>, vector<1x8xf32>,
    } else {
    }
    %c0 = arith.constant 0 : index
    %c0_1 = arith.constant 0 : index
    %3 = vector.load %arg3[%c0, %c0_1] : memref<1x8xi32, #tpu.memory_space<vmem>>, vector<1x8xi32>
    %c0_2 = arith.constant 0 : index
    %c0_3 = arith.constant 0 : index
    %4 = vector.load %arg2[%c0_2, %c0_3] : memref<3x8xf32, #tpu.memory_space<vmem>>, vector<1x8xf32>
    %c1 = arith.constant 1 : index
    %c0_4 = arith.constant 0 : index
    %5 = vector.load %arg2[%c1, %c0_4] : memref<3x8xf32, #tpu.memory_space<vmem>>, vector<1x8xf32>
    %6 = arith.maximumf %4, %5 : vector<1x8xf32>
    %7 = arith.addf %4, %5 : vector<1x8xf32>
    %c1_i32 = arith.constant 1 : i32
    %8 = vector.broadcast %c1_i32 : i32 to vector<1x8xi32>
    %9 = arith.cmpi eq, %3, %8 : vector<1x8xi32>
    %10 = arith.select %9, %5, %4 : vector<1x8xi1>, vector<1x8xf32>
    %c2 = arith.constant 2 : index
    %c0_5 = arith.constant 0 : index
    %11 = vector.load %arg2[%c2, %c0_5] : memref<3x8xf32, #tpu.memory_space<vmem>>, vector<1x8xf32>
    %12 = arith.maximumf %6, %11 : vector<1x8xf32>
    %13 = arith.addf %7, %11 : vector<1x8xf32>
    %c2_i32 = arith.constant 2 : i32
    %14 = vector.broadcast %c2_i32 : i32 to vector<1x8xi32>
    %15 = arith.cmpi eq, %3, %14 : vector<1x8xi32>
    %16 = arith.select %15, %11, %10 : vector<1x8xi1>, vector<1x8xf32>
    %17 = arith.subf %4, %12 : vector<1x8xf32>
    %18 = math.exp %17 : vector<1x8xf32>
    %19 = arith.subf %5, %12 : vector<1x8xf32>
    %20 = math.exp %19 : vector<1x8xf32>
    %21 = arith.addf %18, %20 : vector<1x8xf32>
    %22 = arith.subf %11, %12 : vector<1x8xf32>
    %23 = math.exp %22 : vector<1x8xf32>
    %24 = arith.addf %21, %23 : vector<1x8xf32>
    %25 = math.log %24 : vector<1x8xf32>
    %26 = arith.addf %12, %25 : vector<1x8xf32>
    %cst = arith.constant 1.050000e+00 : f32
    %27 = vector.broadcast %cst : f32 to vector<1x8xf32>
    %28 = arith.mulf %27, %26 : vector<1x8xf32>
    %cst_6 = arith.constant 5.000000e-02 : f32
    %29 = vector.broadcast %cst_6 : f32 to vector<1x8xf32>
    %30 = arith.mulf %29, %13 : vector<1x8xf32>
    %31 = arith.subf %28, %30 : vector<1x8xf32>
    %cst_7 = arith.constant 0.899999976 : f32
    %32 = vector.broadcast %cst_7 : f32 to vector<1x8xf32>
    %33 = arith.mulf %32, %16 : vector<1x8xf32>
    %34 = arith.subf %31, %33 : vector<1x8xf32>
    %c1_i32_8 = arith.constant 1 : i32
    %35 = arith.muli %arg0, %c1_i32_8 : i32
    %36 = arith.addi %35, %arg1 : i32
    %c8_i32 = arith.constant 8 : i32
    %37 = arith.muli %36, %c8_i32 : i32
    %c8_i32_9 = arith.constant 8 : i32
    %38 = arith.addi %37, %c8_i32_9 : i32
    %c8_i32_10 = arith.constant 8 : i32
    %39 = arith.cmpi sle, %38, %c8_i32_10 : i32
    %40 = arith.extui %39 : i1 to i32
    %c0_i32_11 = arith.constant 0 : i32
    %41 = arith.cmpi ne, %40, %c0_i32_11 : i32
    scf.if %41 {
      %c0_17 = arith.constant 0 : index
      %c0_18 = arith.constant 0 : index
      %49 = vector.load %arg5[%c0_17, %c0_18] : memref<1x8xf32, #tpu.memory_space<vmem>>, vector<1x8xf32>
      %50 = arith.addf %49, %34 : vector<1x8xf32>
      %c0_19 = arith.constant 0 : index
      %c0_20 = arith.constant 0 : index
      %51 = vector.load %arg5[%c0_19, %c0_20] : memref<1x8xf32, #tpu.memory_space<vmem>>, vector<1x8xf32>
      tpu.vector_store %arg5[%c0_19, %c0_20], %50 {strides = array<i32>} : memref<1x8xf32, #tpu.memory_space<vmem>>, vector<1x8xf32>,
    } else {
    }
    %c8_i32_12 = arith.constant 8 : i32
    %42 = arith.addi %37, %c8_i32_12 : i32
    %c8_i32_13 = arith.constant 8 : i32
    %43 = arith.cmpi sgt, %42, %c8_i32_13 : i32
    %44 = arith.extui %43 : i1 to i32
    %c0_i32_14 = arith.constant 0 : i32
    %45 = arith.cmpi ne, %44, %c0_i32_14 : i32
    scf.if %45 {
      %49 = tpu.iota {dimensions = array<i32: 1>} : vector<1x8xi32>
      %50 = vector.broadcast %37 : i32 to vector<1x8xi32>
      %51 = arith.addi %50, %49 : vector<1x8xi32>
      %c8_i32_17 = arith.constant 8 : i32
      %52 = vector.broadcast %c8_i32_17 : i32 to vector<1x8xi32>
      %53 = arith.cmpi slt, %51, %52 : vector<1x8xi32>
      %c0_18 = arith.constant 0 : index
      %c0_19 = arith.constant 0 : index
      %54 = vector.load %arg5[%c0_18, %c0_19] : memref<1x8xf32, #tpu.memory_space<vmem>>, vector<1x8xf32>
      %cst_20 = arith.constant 0.000000e+00 : f32
      %55 = vector.broadcast %cst_20 : f32 to vector<1x8xf32>
      %56 = arith.select %53, %34, %55 : vector<1x8xi1>, vector<1x8xf32>
      %57 = arith.addf %54, %56 : vector<1x8xf32>
      %c0_21 = arith.constant 0 : index
      %c0_22 = arith.constant 0 : index
      %58 = vector.load %arg5[%c0_21, %c0_22] : memref<1x8xf32, #tpu.memory_space<vmem>>, vector<1x8xf32>
      tpu.vector_store %arg5[%c0_21, %c0_22], %57 {strides = array<i32>} : memref<1x8xf32, #tpu.memory_space<vmem>>, vector<1x8xf32>,
    } else {
    }
    %c0_i32_15 = arith.constant 0 : i32
    %46 = arith.cmpi eq, %arg1, %c0_i32_15 : i32
    %47 = arith.extui %46 : i1 to i32
    %c0_i32_16 = arith.constant 0 : i32
    %48 = arith.cmpi ne, %47, %c0_i32_16 : i32
    scf.if %48 {
      %c0_17 = arith.constant 0 : index
      %c0_18 = arith.constant 0 : index
      %49 = vector.load %arg5[%c0_17, %c0_18] : memref<1x8xf32, #tpu.memory_space<vmem>>, vector<1x8xf32>
      %50 = vector.shape_cast %49 : vector<1x8xf32> to vector<1x1x8xf32>
      %cst_19 = arith.constant dense<0.000000e+00> : vector<1xf32>
      %51 = vector.multi_reduction <add>, %50, %cst_19 [1, 2] : vector<1x1x8xf32> to vector<1xf32>
      %52 = vector.shape_cast %51 : vector<1xf32> to vector<1x1x1xf32>
      %53 = vector.extract %52[0, 0, 0] : f32 from vector<1x1x1xf32>
      %c0_20 = arith.constant 0 : index
      %c0_21 = arith.constant 0 : index
      %54 = memref.load %arg4[%c0_20, %c0_21] : memref<1x1xf32, #tpu.memory_space<smem>>
      memref.store %53, %arg4[%c0_20, %c0_21] : memref<1x1xf32, #tpu.memory_space<smem>>
    } else {
    }
    return
  }
  func.func @transform_0(%arg0: i32, %arg1: i32) -> (i32, i32) {
    %c1_i32 = arith.constant 1 : i32
    %0 = arith.muli %arg0, %c1_i32 : i32
    %1 = arith.addi %0, %arg1 : i32
    %c0_i32 = arith.constant 0 : i32
    %2 = arith.minsi %1, %c0_i32 : i32
    %c0_i32_0 = arith.constant 0 : i32
    %c0_i32_1 = arith.constant 0 : i32
    return %c0_i32_0, %2 : i32, i32
  }
  func.func @transform_1(%arg0: i32, %arg1: i32) -> (i32, i32) {
    %c1_i32 = arith.constant 1 : i32
    %0 = arith.muli %arg0, %c1_i32 : i32
    %1 = arith.addi %0, %arg1 : i32
    %c0_i32 = arith.constant 0 : i32
    %2 = arith.minsi %1, %c0_i32 : i32
    %c0_i32_0 = arith.constant 0 : i32
    %c0_i32_1 = arith.constant 0 : i32
    return %c0_i32_0, %2 : i32, i32
  }
  func.func @transform_2(%arg0: i32, %arg1: i32) -> (i32, i32) {
    %c0_i32 = arith.constant 0 : i32
    %c0_i32_0 = arith.constant 0 : i32
    return %arg0, %c0_i32 : i32, i32
  }
}

</mosaic_0001>

<llo_original>
// kernel: tpu_custom_call.1
$region0: #{tpu_custom_call.1}
  #allocation0 [shape = 'u32[]', space=smem, size = 0x4, offset = 0x4, fixed_abs, tag = 'smem constant byte address 0x4 - core index']
  #allocation1 [shape = 'u32[144,128]{1,0:T(1,128)}', space=vmem, size = 0x12000, scoped, tag = 'internal scratch']
  #allocation2 [shape = 'f32[1,8]{1,0:T(1,128)}', space=vmem, size = 0x200, scoped, tag = 'scratch operand']
  %s0 = inlined_call_operand.hbm [shape: f32[3,8], index: 0, kind: input, shape index: {}]
  %s1 = inlined_call_operand.vmem [shape: s32[1,8], index: 1, kind: input, shape index: {}]
  %s2 = inlined_call_operand.hbm [shape: f32[1,1], index: 2, kind: output, shape index: {}]
  %s3 = sld [smem:[#allocation0]]
  $region38: #{tpu_custom_call.1} parent=0
    _
  %s5 = ssub.s32 1, %s3
  %s6 = scalar_select 0, %s5, %s3
  $region1: #{tpu_custom_call.1} parent=0
    #allocation3 [shape = 'u8[2048]{0}', space=vmem, size = 0x800, scoped, tag = 'input window, operand 0, single buffered']
    #allocation4 [shape = 's32[1]{0}', space=sflag, size = 0x4, scoped, tag = 'scoped memory for tpu_custom_call.1']
    #allocation5 [shape = 's32[1]{0}', space=sflag, size = 0x4, scoped, tag = 'scoped memory for tpu_custom_call.1']
    #allocation6 [shape = 'u8[512]{0}', space=smem, size = 0x200, scoped, tag = 'output window, operand 0, single buffered']
    %7 = vsyncpa [#allocation4], 0
    %8 = vsyncpa [#allocation5], 0
    // Predicated region
    $region2: #{tpu_custom_call.1} parent=1 // pred_check
      _
    $region3: #{tpu_custom_call.1} parent=1 // pred_check_branch
      %10 = sbr.rel (0) target = $region5
    $region4: #{tpu_custom_call.1} parent=1 // pred_region
      %s11 = sadd.s32 0, 0
      %p12 = scmp.lt.s32.totalorder %s11, 0
      %s13 = scalar_select %p12, %s11, 0
      %s15 = ssub.s32 64, 64
      %16 = vsyncadd [#allocation4], %s15
      %s17 = smul.addr %s13, 64
      %s18 = scalar_lea.hbm %s0, %s17
      %s20 = sshll.u32 [#allocation3], 4
      %s21 = int_to_ptr.vmem [resolvable:$true] %s20
      %23 = dma.hbm_to_vmem [thread:$0]  %s18, 64, %s21, [#allocation4]
    $region5: #{tpu_custom_call.1} parent=1 // pred_fallthru
      _
    // Predicated region
    $region6: #{tpu_custom_call.1} parent=1 // pred_check
      _
    $region7: #{tpu_custom_call.1} parent=1 // pred_check_branch
      %25 = sbr.rel (0) target = $region9
    $region8: #{tpu_custom_call.1} parent=1 // pred_region
      %s26 = sadd.s32 0, 0
      %p27 = scmp.lt.s32.totalorder %s26, 0
      %s28 = scalar_select %p27, %s26, 0
      %p29 = scmp.lt.s32.totalorder %s28, 0
      %s30 = scalar_select %p29, %s28, 0
      %s31 = scalar_lea.vmem %s1, %s30
      %s32 = sadd.s32 0, 0
      %p33 = scmp.lt.s32.totalorder %s32, 0
      %s34 = scalar_select %p33, %s32, 0
    $region9: #{tpu_custom_call.1} parent=1 // pred_fallthru
      _
    // Predicated region
    $region10: #{tpu_custom_call.1} parent=1 // pred_check
      _
    $region11: #{tpu_custom_call.1} parent=1 // pred_check_branch
      %36 = sbr.rel (0) target = $region13
    $region12: #{tpu_custom_call.1} parent=1 // pred_region
      %37 = dma.done [#allocation4], 64
    $region13: #{tpu_custom_call.1} parent=1 // pred_fallthru
      _
    %s38 = sadd.s32 0, 0
    %p39 = scmp.lt.s32.totalorder %s38, 0
    %s40 = scalar_select %p39, %s38, 0
    %p41 = scmp.lt.s32.totalorder %s40, 0
    %s42 = scalar_select %p41, %s40, 0
    %s43 = scalar_lea.vmem %s1, %s42
    %s44 = sadd.s32 0, 0
    %p45 = scmp.lt.s32.totalorder %s44, 0
    %s46 = scalar_select %p45, %s44, 0
    %s47 = sadd.s32 0, 0
    %p48 = scmp.lt.s32.totalorder %s47, 0
    %s49 = scalar_select %p48, %s47, 0
    %p50 = scmp.lt.s32.totalorder %s49, 0
    %s51 = scalar_select %p50, %s49, 0
    %s52 = scalar_lea.vmem %s1, %s51
    %s53 = sadd.s32 0, 0
    %p54 = scmp.lt.s32.totalorder %s53, 0
    %s55 = scalar_select %p54, %s53, 0
    %p56 = scmp.eq.s32.totalorder 0, 0
    // Predicated region
    $region14: #{tpu_custom_call.1} parent=1 // pred_check
      %p57 = pneg %p56
    $region15: #{tpu_custom_call.1} parent=1 // pred_check_branch
      %59 = sbr.rel (%p57) target = $region17
    $region16: #{tpu_custom_call.1} parent=1 // pred_region
      %vm60 = vcmask 57344
      %61 = vst.msk [vmem:[#allocation2] sm:$0x1] %vm60, 0.0
    $region17: #{tpu_custom_call.1} parent=1 // pred_fallthru
      _
    %v62 = vld [vmem:[%s52] sm:$0x1]
    %v63 = vld [vmem:[#allocation3] sm:$0x1]
    %v64 = vld [vmem:[#allocation3 + $0x1] sm:$0x1]
    %v65 = vmax.f32 %v63, %v64
    %v66 = vadd.f32 %v63, %v64
    %vm67 = vcmp.eq.s32.totalorder %v62, 1
    %v68 = vsel %vm67, %v64, %v63
    %v69 = vld [vmem:[#allocation3 + $0x2] sm:$0x1]
    %v70 = vmax.f32 %v65, %v69
    %v71 = vadd.f32 %v66, %v69
    %vm72 = vcmp.eq.s32.totalorder %v62, 2
    %v73 = vsel %vm72, %v69, %v68
    %v74 = vsub.f32 %v63, %v70
    %v75 = vmul.f32 %v74, 1.442695
    %v76 = vpow.pop %v75
    %v77 = vsub.f32 %v64, %v70
    %v78 = vmul.f32 %v77, 1.442695
    %v79 = vpow.pop %v78
    %v80 = vadd.f32 %v76, %v79
    %v81 = vsub.f32 %v69, %v70
    %v82 = vmul.f32 %v81, 1.442695
    %v83 = vpow.pop %v82
    %v84 = vadd.f32 %v80, %v83
    %v85 = vlog2.pop %v84
    %v86 = vmul.f32 %v85, 0.6931472
    %v87 = vadd.f32 %v70, %v86
    %v88 = vmul.f32 %v87, 1.05
    %v89 = vmul.f32 %v71, 0.05
    %v90 = vsub.f32 %v88, %v89
    %v91 = vmul.f32 %v73, 0.9
    %v92 = vsub.f32 %v90, %v91
    %s93 = sadd.s32 0, 0
    %s94 = smul.u32 %s93, 8
    %s95 = sadd.s32 %s94, 8
    %p96 = scmp.le.s32.totalorder %s95, 8
    // Predicated region
    $region18: #{tpu_custom_call.1} parent=1 // pred_check
      %p97 = pneg %p96
    $region19: #{tpu_custom_call.1} parent=1 // pred_check_branch
      %99 = sbr.rel (%p97) target = $region21
    $region20: #{tpu_custom_call.1} parent=1 // pred_region
      %v100 = vld [vmem:[#allocation2] sm:$0x1]
      %v101 = vadd.f32 %v100, %v92
      %vm102 = vcmask 57344
      %103 = vst.msk [vmem:[#allocation2] sm:$0x1] %vm102, %v101
    $region21: #{tpu_custom_call.1} parent=1 // pred_fallthru
      _
    %p104 = scmp.gt.s32.totalorder %s95, 8
    // Predicated region
    $region22: #{tpu_custom_call.1} parent=1 // pred_check
      %p105 = pneg %p104
    $region23: #{tpu_custom_call.1} parent=1 // pred_check_branch
      %107 = sbr.rel (%p105) target = $region25
    $region24: #{tpu_custom_call.1} parent=1 // pred_region
      %v108 = vlaneseq
      %v109 = vand.u32 %v108, 127
      %v110 = vstv %s94
      %v111 = vadd.s32 %v110, %v109
      %vm112 = vcmp.lt.s32.totalorder %v111, 8
      %v113 = vld [vmem:[#allocation2] sm:$0x1]
      %v114 = vsel %vm112, %v92, 0.0
      %v115 = vadd.f32 %v113, %v114
      %vm116 = vcmask 57344
      %117 = vst.msk [vmem:[#allocation2] sm:$0x1] %vm116, %v115
    $region25: #{tpu_custom_call.1} parent=1 // pred_fallthru
      _
    // Predicated region
    $region26: #{tpu_custom_call.1} parent=1 // pred_check
      %p118 = pneg %p56
    $region27: #{tpu_custom_call.1} parent=1 // pred_check_branch
      %120 = sbr.rel (%p118) target = $region29
    $region28: #{tpu_custom_call.1} parent=1 // pred_region
      %v121 = vld [vmem:[#allocation2] sm:$0x1]
      %vm122 = vcmask 57344
      %v123 = vsel %vm122, %v121, 0.0
      %124 = vadd.xlane.f32.xlu0 %v123
      %v125 = vpop.xlane.xlu0 %124
      %v126 = vrot.slane %v125, 4
      %v127 = vadd.f32 %v125, %v126
      %v128 = vrot.slane %v127, 2
      %v129 = vadd.f32 %v127, %v128
      %v130 = vrot.slane %v129, 1
      %v131 = vadd.f32 %v129, %v130
      %s132 = vtos %v131
      %s133 = scalar_lea.smem [#allocation6], 0
      %134 = sst [smem:[%s133]] %s132
    $region29: #{tpu_custom_call.1} parent=1 // pred_fallthru
      _
    // Predicated region
    $region30: #{tpu_custom_call.1} parent=1 // pred_check
      _
    $region31: #{tpu_custom_call.1} parent=1 // pred_check_branch
      %136 = sbr.rel (0) target = $region33
    $region32: #{tpu_custom_call.1} parent=1 // pred_region
      %s138 = ssub.s32 16, 16
      %139 = vsyncadd [#allocation5], %s138
      %142 = dma.smem_to_hbm [#allocation6], 16, %s2, [#allocation5]
    $region33: #{tpu_custom_call.1} parent=1 // pred_fallthru
      _
    // Predicated region
    $region34: #{tpu_custom_call.1} parent=1 // pred_check
      _
    $region35: #{tpu_custom_call.1} parent=1 // pred_check_branch
      %144 = sbr.rel (0) target = $region37
    $region36: #{tpu_custom_call.1} parent=1 // pred_region
      %145 = dma.done [#allocation5], 16
    $region37: #{tpu_custom_call.1} parent=1 // pred_fallthru
      _
    %146 = sfence
    %147 = vsyncpa [#allocation4], 1
    %148 = vsyncpa [#allocation5], 1

</llo_original>
